<compile_context>
chip_gen: v5e
topology: v5e:2x2
jax: 0.10.0
libtpu: 0.0.40
codegen_flags: <defaults>
</compile_context>

<pallas_src>
import functools
import math

import jax
import jax.numpy as jnp
from jax.experimental import pallas as pl
from jax.experimental.pallas import tpu as pltpu

LANE = 128        # TPU lane width
SUB = 8           # f32 sublane granularity
BSUB = 16         # bf16 sublane packing -> keep batch blocks a multiple of 16
TK_MAX = 2048     # reduction tile cap
BM_TARGET = 256   # batch rows per block for large B (weight-stream amortisation)
VMEM_BUDGET = 24 * 1024 * 1024   # double-buffered footprint budget (v7x-safe)


def _round_up(n, m):
    return ((n + m - 1) // m) * m


def prepare_projector_params(params, seq_len, enc_in):
    """One-time parameter preparation (NOT per-forward work).

    * Fuses the circular Conv1d(seq_len->1, k, circular, no bias) with the
      conv half of Linear1, stacks the stats half (w1b) underneath, zero-pads
      rows to a multiple of the reduction tile, stores it bf16:
          wbig (K_pad, lane),  lane = 128-padded max hidden width.
    * Packs b1 / w2 / b2 / w3 into one zero-padded f32 (rows, lane) slab.
    """
    S, E = seq_len, enc_in
    conv_w = jnp.asarray(params["conv_w"], jnp.float32)          # (S, K)
    K = conv_w.shape[1]
    pad = 1                                                      # circular, padding=1

    w1 = jnp.asarray(params["w1"], jnp.float32)                  # (2E, H0)
    w1a, w1b = w1[:E], w1[E:]
    b1 = jnp.asarray(params["b1"], jnp.float32)
    w2 = jnp.asarray(params["w2"], jnp.float32)                  # (H0, H1)
    b2 = jnp.asarray(params["b2"], jnp.float32)
    w3 = jnp.asarray(params["w3"], jnp.float32)                  # (H1, OUT), no bias
    H0, H1, OUT = w1.shape[1], w2.shape[1], w3.shape[1]

    lane = LANE * ((max(H0, H1, OUT) + LANE - 1) // LANE)

    # Fused conv (+) first-linear conv-half:
    #   wc1[s*E + j, h] = sum_k conv_w[s, k] * w1a[(j - k + pad) % E, h]
    # so that  conv(x) @ w1a == x_flat @ wc1   (x_flat row-major (B, S*E)).
    rolled = jnp.stack([jnp.roll(w1a, k - pad, axis=0) for k in range(K)], 0)  # (K,E,H0)
    wc1 = jnp.einsum("sk,keh->seh", conv_w, rolled).reshape(S * E, H0)

    # Stats half rides the same reduction: [x_flat | stats] @ [wc1 ; w1b].
    se_total = S * E + E
    tk = min(TK_MAX, _round_up(se_total, LANE))        # reduction tile (mult of 128)
    k_pad = _round_up(se_total, tk)                    # zero-padded reduction length

    wbig = jnp.zeros((k_pad, lane), jnp.float32)
    wbig = wbig.at[:S * E, :H0].set(wc1)
    wbig = wbig.at[S * E:se_total, :H0].set(w1b)
    wbig = wbig.astype(jnp.bfloat16)                   # dominant HBM stream -> bf16

    # Packed f32 MLP slab; 8-aligned row offsets, columns zero-padded to
    # `lane` (exact through the ReLUs: relu(0 + 0) == 0).
    # TODO(synk): kernel is specialised to hidden_layers == 2 (the MaelNet
    # default); deeper backbones would need extra slab segments + dots.
    o_b1 = 0
    o_w2 = SUB
    o_b2 = o_w2 + lane
    o_w3 = o_b2 + SUB
    rows = o_w3 + lane
    slab = jnp.zeros((rows, lane), jnp.float32)
    slab = slab.at[o_b1, :H0].set(b1)
    slab = slab.at[o_w2:o_w2 + H0, :H1].set(w2)
    slab = slab.at[o_b2, :H1].set(b2)
    slab = slab.at[o_w3:o_w3 + H1, :OUT].set(w3)

    meta = dict(S=S, E=E, H0=H0, H1=H1, OUT=OUT, lane=lane,
                se_total=se_total, tk=tk, k_pad=k_pad,
                o_b1=o_b1, o_w2=o_w2, o_b2=o_b2, o_w3=o_w3)
    return dict(wbig=jax.device_put(wbig), slab=jax.device_put(slab), meta=meta)


def _projector_kernel(x_ref, w_ref, slab_ref, out_ref, acc_ref,
                      *, lane, o_b1, o_w2, o_b2, o_w3):
    k = pl.program_id(1)

    @pl.when(k == 0)
    def _():
        acc_ref[...] = jnp.zeros_like(acc_ref)

    # Fused circular-conv + full Linear1 (conv AND stats halves), tiled over
    # the padded (S*E + E) reduction.  bf16 operands, f32 accumulation.
    acc_ref[...] += jnp.dot(x_ref[...], w_ref[...],
                            preferred_element_type=jnp.float32)

    @pl.when(k == pl.num_programs(1) - 1)
    def _():
        b1 = slab_ref[pl.ds(o_b1, 1), :]          # (1, lane)
        w2 = slab_ref[pl.ds(o_w2, lane), :]       # (lane, lane)
        b2 = slab_ref[pl.ds(o_b2, 1), :]          # (1, lane)
        w3 = slab_ref[pl.ds(o_w3, lane), :]       # (lane, lane)

        h = jnp.maximum(acc_ref[...] + b1, 0.0)                              # ReLU
        h = jnp.maximum(
            jnp.dot(h, w2, preferred_element_type=jnp.float32) + b2, 0.0)    # ReLU
        y = jnp.dot(h, w3, preferred_element_type=jnp.float32)               # no bias
        out_ref[...] = y.astype(out_ref.dtype)                               # lane-dense


def projector_forward(x, stats, prep):
    """x: (B, S, E), stats: (B, 1, E) -> (B, output_dim)."""
    B, S, E = x.shape
    m = prep["meta"]
    assert (S, E) == (m["S"], m["E"])
    lane, OUT = m["lane"], m["OUT"]
    se_total, tk, k_pad = m["se_total"], m["tk"], m["k_pad"]
    nk = k_pad // tk
    slab_rows = prep["slab"].shape[0]

    # Batch blocking: >= 16 sublanes (bf16 packing); large B uses ~256-row
    # blocks so the dominant weight stream (re-fetched once per batch block)
    # is streamed as few times as possible.
    if B <= 128:
        nb = 1
        bm = _round_up(max(B, BSUB), BSUB)
        # TODO(synk): on v7x (2 TensorCores) a single batch block leaves one
        # core idle for small B; splitting the reduction across cores needs a
        # cross-core combine and does not pay while the kernel is
        # weight-stream-bound.
    else:
        nb = math.ceil(B / BM_TARGET)
        bm = _round_up(math.ceil(B / nb), BSUB)
    b_pad = nb * bm

    # Explicit double-buffered VMEM budget (v7x: 64 MiB physical / 32 scoped).
    vmem_bytes = (2 * bm * tk * 2                # x stream, bf16
                  + 2 * tk * lane * 2            # fused weight stream, bf16
                  + 2 * slab_rows * lane * 4     # f32 slab (grid-invariant)
                  + 2 * bm * lane * 4            # f32 output slab
                  + bm * lane * 4)               # f32 accumulator scratch
    assert vmem_bytes < VMEM_BUDGET, (
        f"projector kernel VMEM footprint {vmem_bytes / 2**20:.1f} MiB exceeds "
        f"{VMEM_BUDGET / 2**20:.0f} MiB budget; shrink bm/tk")

    # [x_flat | stats] concatenated, cast bf16, zero-padded to (b_pad, k_pad).
    xcat = jnp.concatenate(
        [x.reshape(B, S * E), stats.reshape(B, E)], axis=-1).astype(jnp.bfloat16)
    xcat = jnp.zeros((b_pad, k_pad), jnp.bfloat16).at[:B, :se_total].set(xcat)

    kernel = functools.partial(
        _projector_kernel, lane=lane,
        o_b1=m["o_b1"], o_w2=m["o_w2"], o_b2=m["o_b2"], o_w3=m["o_w3"])

    out_padded = pl.pallas_call(
        kernel,
        out_shape=jax.ShapeDtypeStruct((b_pad, lane), jnp.float32),
        grid_spec=pltpu.PrefetchScalarGridSpec(
            num_scalar_prefetch=0,
            grid=(nb, nk),
            in_specs=[
                pl.BlockSpec((bm, tk), lambda i, k: (i, k)),           # [x | stats] bf16
                pl.BlockSpec((tk, lane), lambda i, k: (k, 0)),         # fused W1, bf16
                pl.BlockSpec((slab_rows, lane), lambda i, k: (0, 0)),  # f32 MLP slab
            ],
            out_specs=pl.BlockSpec((bm, lane), lambda i, k: (i, 0)),
            scratch_shapes=[pltpu.VMEM((bm, lane), jnp.float32)],
        ),
        compiler_params=pltpu.CompilerParams(
            dimension_semantics=("parallel", "arbitrary"),
            vmem_limit_bytes=32 * 1024 * 1024),
    )(xcat, prep["wbig"], prep["slab"])

    return out_padded[:B, :OUT]


def projector_reference(x, stats, params):
    """Pure-JAX f32 reference mirroring the PyTorch forward."""
    B, S, E = x.shape
    w = params["conv_w"]
    K = w.shape[1]
    conv = jnp.zeros((B, E), jnp.float32)
    for k in range(K):  # circular padding=1: taps x[..., (e + k - 1) mod E]
        conv = conv + jnp.einsum("bse,s->be", jnp.roll(x, 1 - k, axis=-1), w[:, k])
    feat = jnp.concatenate([conv, stats.reshape(B, E)], axis=-1)   # (B, 2E)
    h = jnp.maximum(feat @ params["w1"] + params["b1"], 0.0)
    h = jnp.maximum(h @ params["w2"] + params["b2"], 0.0)
    return h @ params["w3"]


if __name__ == "__main__":
    # Config: enc_in=8, seq_len=16, hidden_dims=[32, 32], hidden_layers=2,
    #         output_dim=8, kernel_size=3, batch=2
    B, S, E = 2, 16, 8
    H0, H1, OUT, K = 32, 32, 8, 3

    key = jax.random.PRNGKey(0)
    ks = jax.random.split(key, 8)
    u = lambda k, shape, bound: jax.random.uniform(
        k, shape, jnp.float32, minval=-bound, maxval=bound)

    # Deterministic synthetic parameters (PyTorch shapes, stored transposed
    # so forward uses y = x @ W).
    params = {
        "conv_w": u(ks[0], (S, K), 0.1),      # Conv1d weight[0] (in=S, k=3), no bias
        "w1": u(ks[1], (2 * E, H0), 0.1),     # Linear(2E -> H0)
        "b1": u(ks[2], (H0,), 0.1),
        "w2": u(ks[3], (H0, H1), 0.1),        # Linear(H0 -> H1)
        "b2": u(ks[4], (H1,), 0.1),
        "w3": u(ks[5], (H1, OUT), 0.1),       # Linear(H1 -> OUT, bias=False)
    }

    x = jax.random.normal(ks[6], (B, S, E), jnp.float32)
    stats = jax.random.normal(ks[7], (B, 1, E), jnp.float32)

    prep = prepare_projector_params(params, S, E)   # one-time parameter prep
    y = projector_forward(x, stats, prep)
    y = jax.block_until_ready(y)

    y_ref = projector_reference(x, stats, params)
    assert y.shape == (B, OUT)
    # bf16-streamed operands with f32 accumulation -> ~0.5% expected error.
    assert jnp.allclose(y, y_ref, atol=1e-2, rtol=1e-2), "mismatch vs JAX reference"

    print("KERNEL_OK")
</pallas_src>

<mosaic_0001>
module attributes {stable_mosaic.version = 11 : i64} {
  func.func @_projector_kernel(%arg0: i32, %arg1: i32, %arg2: memref<16x256xbf16, #tpu.memory_space<vmem>>, %arg3: memref<256x128xbf16, #tpu.memory_space<vmem>>, %arg4: memref<272x128xf32, #tpu.memory_space<vmem>>, %arg5: memref<16x128xf32, #tpu.memory_space<vmem>>, %arg6: memref<16x128xf32, #tpu.memory_space<vmem>>) attributes {dimension_semantics = [#tpu.dimension_semantics<parallel>, #tpu.dimension_semantics<arbitrary>], iteration_bounds = array<i64: 1, 1>, scalar_prefetch = 0 : i64, scratch_operands = 1 : i64, tpu.core_type = #tpu.core_type<tc>, window_params = [{transform_indices = @transform_0, window_bounds = array<i64: 16, 256>}, {transform_indices = @transform_1, window_bounds = array<i64: 256, 128>}, {pipeline_mode = #tpu.pipeline_mode<synchronous>, transform_indices = @transform_2, window_bounds = array<i64: 272, 128>}, {transform_indices = @transform_3, window_bounds = array<i64: 16, 128>}]} {
    %c0_i32 = arith.constant 0 : i32
    %0 = arith.cmpi eq, %arg1, %c0_i32 : i32
    %1 = arith.extui %0 : i1 to i32
    %c0_i32_0 = arith.constant 0 : i32
    %2 = arith.cmpi ne, %1, %c0_i32_0 : i32
    scf.if %2 {
      %cst_10 = arith.constant 0.000000e+00 : f32
      %12 = vector.broadcast %cst_10 : f32 to vector<16x128xf32>
      %c0_11 = arith.constant 0 : index
      %c0_12 = arith.constant 0 : index
      %13 = vector.load %arg6[%c0_11, %c0_12] : memref<16x128xf32, #tpu.memory_space<vmem>>, vector<16x128xf32>
      tpu.vector_store %arg6[%c0_11, %c0_12], %12 {strides = array<i32>} : memref<16x128xf32, #tpu.memory_space<vmem>>, vector<16x128xf32>,
    } else {
    }
    %c0 = arith.constant 0 : index
    %c0_1 = arith.constant 0 : index
    %3 = vector.load %arg6[%c0, %c0_1] : memref<16x128xf32, #tpu.memory_space<vmem>>, vector<16x128xf32>
    %c0_2 = arith.constant 0 : index
    %c0_3 = arith.constant 0 : index
    %4 = vector.load %arg2[%c0_2, %c0_3] : memref<16x256xbf16, #tpu.memory_space<vmem>>, vector<16x256xbf16>
    %c0_4 = arith.constant 0 : index
    %c0_5 = arith.constant 0 : index
    %5 = vector.load %arg3[%c0_4, %c0_5] : memref<256x128xbf16, #tpu.memory_space<vmem>>, vector<256x128xbf16>
    %cst = arith.constant dense<0.000000e+00> : vector<16x128xf32>
    %6 = tpu.matmul %4, %5, %cst {dimension_numbers = #tpu.dot_dimension_numbers<[1], [0], [0], [1], [0, 0, 1, 1], [], []>} : vector<16x256xbf16>, vector<256x128xbf16>, vector<16x128xf32> -> vector<16x128xf32>
    %7 = arith.addf %3, %6 : vector<16x128xf32>
    %c0_6 = arith.constant 0 : index
    %c0_7 = arith.constant 0 : index
    %8 = vector.load %arg6[%c0_6, %c0_7] : memref<16x128xf32, #tpu.memory_space<vmem>>, vector<16x128xf32>
    tpu.vector_store %arg6[%c0_6, %c0_7], %7 {strides = array<i32>} : memref<16x128xf32, #tpu.memory_space<vmem>>, vector<16x128xf32>,
    %c0_i32_8 = arith.constant 0 : i32
    %9 = arith.cmpi eq, %arg1, %c0_i32_8 : i32
    %10 = arith.extui %9 : i1 to i32
    %c0_i32_9 = arith.constant 0 : i32
    %11 = arith.cmpi ne, %10, %c0_i32_9 : i32
    scf.if %11 {
      %c0_10 = arith.constant 0 : index
      %c0_11 = arith.constant 0 : index
      %12 = vector.load %arg4[%c0_10, %c0_11] : memref<272x128xf32, #tpu.memory_space<vmem>>, vector<1x128xf32>
      %c8 = arith.constant 8 : index
      %c0_12 = arith.constant 0 : index
      %13 = vector.load %arg4[%c8, %c0_12] : memref<272x128xf32, #tpu.memory_space<vmem>>, vector<128x128xf32>
      %c136 = arith.constant 136 : index
      %c0_13 = arith.constant 0 : index
      %14 = vector.load %arg4[%c136, %c0_13] : memref<272x128xf32, #tpu.memory_space<vmem>>, vector<1x128xf32>
      %c144 = arith.constant 144 : index
      %c0_14 = arith.constant 0 : index
      %15 = vector.load %arg4[%c144, %c0_14] : memref<272x128xf32, #tpu.memory_space<vmem>>, vector<128x128xf32>
      %c0_15 = arith.constant 0 : index
      %c0_16 = arith.constant 0 : index
      %16 = vector.load %arg6[%c0_15, %c0_16] : memref<16x128xf32, #tpu.memory_space<vmem>>, vector<16x128xf32>
      %17 = vector.broadcast %12 : vector<1x128xf32> to vector<16x128xf32>
      %18 = arith.addf %16, %17 : vector<16x128xf32>
      %cst_17 = arith.constant 0.000000e+00 : f32
      %19 = vector.broadcast %cst_17 : f32 to vector<16x128xf32>
      %20 = arith.maximumf %18, %19 : vector<16x128xf32>
      %cst_18 = arith.constant dense<0.000000e+00> : vector<16x128xf32>
      %21 = tpu.matmul %20, %13, %cst_18 {dimension_numbers = #tpu.dot_dimension_numbers<[1], [0], [0], [1], [0, 0, 1, 1], [], []>} : vector<16x128xf32>, vector<128x128xf32>, vector<16x128xf32> -> vector<16x128xf32>
      %22 = vector.broadcast %14 : vector<1x128xf32> to vector<16x128xf32>
      %23 = arith.addf %21, %22 : vector<16x128xf32>
      %cst_19 = arith.constant 0.000000e+00 : f32
      %24 = vector.broadcast %cst_19 : f32 to vector<16x128xf32>
      %25 = arith.maximumf %23, %24 : vector<16x128xf32>
      %cst_20 = arith.constant dense<0.000000e+00> : vector<16x128xf32>
      %26 = tpu.matmul %25, %15, %cst_20 {dimension_numbers = #tpu.dot_dimension_numbers<[1], [0], [0], [1], [0, 0, 1, 1], [], []>} : vector<16x128xf32>, vector<128x128xf32>, vector<16x128xf32> -> vector<16x128xf32>
      %c0_21 = arith.constant 0 : index
      %c0_22 = arith.constant 0 : index
      %27 = vector.load %arg5[%c0_21, %c0_22] : memref<16x128xf32, #tpu.memory_space<vmem>>, vector<16x128xf32>
      tpu.vector_store %arg5[%c0_21, %c0_22], %26 {strides = array<i32>} : memref<16x128xf32, #tpu.memory_space<vmem>>, vector<16x128xf32>,
    } else {
    }
    return
  }
  func.func @transform_0(%arg0: i32, %arg1: i32) -> (i32, i32) {
    %c0_i32 = arith.constant 0 : i32
    return %arg0, %arg1 : i32, i32
  }
  func.func @transform_1(%arg0: i32, %arg1: i32) -> (i32, i32) {
    %c0_i32 = arith.constant 0 : i32
    %c0_i32_0 = arith.constant 0 : i32
    return %arg1, %c0_i32 : i32, i32
  }
  func.func @transform_2(%arg0: i32, %arg1: i32) -> (i32, i32) {
    %c0_i32 = arith.constant 0 : i32
    %c0_i32_0 = arith.constant 0 : i32
    %c0_i32_1 = arith.constant 0 : i32
    return %c0_i32, %c0_i32_0 : i32, i32
  }
  func.func @transform_3(%arg0: i32, %arg1: i32) -> (i32, i32) {
    %c0_i32 = arith.constant 0 : i32
    %c0_i32_0 = arith.constant 0 : i32
    return %arg0, %c0_i32 : i32, i32
  }
}

</mosaic_0001>

<llo_original>
// kernel: tpu_custom_call.1
$region0: #{tpu_custom_call.1}
  #allocation0 [shape = 'u32[]', space=smem, size = 0x4, offset = 0x4, fixed_abs, tag = 'smem constant byte address 0x4 - core index']
  #allocation1 [shape = 'u32[72,128]{1,0:T(1,128)}', space=vmem, size = 0x9000, scoped, tag = 'internal scratch']
  #allocation2 [shape = 'f32[16,128]{1,0:T(8,128)}', space=vmem, size = 0x2000, scoped, tag = 'scratch operand']
  %s0 = inlined_call_operand.hbm [shape: bf16[16,256], index: 0, kind: input, shape index: {}]
  %s1 = inlined_call_operand.hbm [shape: bf16[256,128], index: 1, kind: input, shape index: {}]
  %s2 = inlined_call_operand.hbm [shape: f32[272,128], index: 2, kind: input, shape index: {}]
  %s3 = inlined_call_operand.hbm [shape: f32[16,128], index: 3, kind: output, shape index: {}]
  %s4 = sld [smem:[#allocation0]]
  $region42: #{tpu_custom_call.1} parent=0
    _
  %s6 = ssub.s32 1, %s4
  %s7 = scalar_select 0, %s6, %s4
  $region1: #{tpu_custom_call.1} parent=0
    #allocation3 [shape = 'u8[8192]{0}', space=vmem, size = 0x2000, scoped, tag = 'input window, operand 0, single buffered']
    #allocation4 [shape = 's32[1]{0}', space=sflag, size = 0x4, scoped, tag = 'scoped memory for tpu_custom_call.1']
    #allocation5 [shape = 's32[1]{0}', space=sflag, size = 0x4, scoped, tag = 'scoped memory for tpu_custom_call.1']
    #allocation6 [shape = 'u8[65536]{0}', space=vmem, size = 0x10000, scoped, tag = 'input window, operand 1, single buffered']
    #allocation7 [shape = 's32[1]{0}', space=sflag, size = 0x4, scoped, tag = 'scoped memory for tpu_custom_call.1']
    #allocation8 [shape = 'u8[139264]{0}', space=vmem, size = 0x22000, scoped, tag = 'input window, operand 2, single buffered']
    #allocation9 [shape = 'u8[8192]{0}', space=vmem, size = 0x2000, scoped, tag = 'output window, operand 0, single buffered']
    %8 = vsyncpa [#allocation4], 0
    %9 = vsyncpa [#allocation7], 0
    %10 = vsyncpa [#allocation5], 0
    // Predicated region
    $region2: #{tpu_custom_call.1} parent=1 // pred_check
      _
    $region3: #{tpu_custom_call.1} parent=1 // pred_check_branch
      %12 = sbr.rel (0) target = $region5
    $region4: #{tpu_custom_call.1} parent=1 // pred_region
      %14 = vsyncadd [#allocation4], 0
      %s15 = sshll.u32 %s0, 4
      %s16 = int_to_ptr.hbm [resolvable:$true] %s15
      %s17 = sshll.u32 [#allocation3], 4
      %s18 = int_to_ptr.vmem [resolvable:$true] %s17
      %23 = dma.hbm_to_vmem [thread:$0]  %s16, 256, %s18, [#allocation4], 128, 128, 8
    $region5: #{tpu_custom_call.1} parent=1 // pred_fallthru
      _
    // Predicated region
    $region6: #{tpu_custom_call.1} parent=1 // pred_check
      _
    $region7: #{tpu_custom_call.1} parent=1 // pred_check_branch
      %25 = sbr.rel (0) target = $region9
    $region8: #{tpu_custom_call.1} parent=1 // pred_region
      %27 = vsyncadd [#allocation7], 0
      %s28 = sshll.u32 %s1, 4
      %s29 = int_to_ptr.hbm [resolvable:$true] %s28
      %s30 = sshll.u32 [#allocation6], 4
      %s31 = int_to_ptr.vmem [resolvable:$true] %s30
      %36 = dma.hbm_to_vmem [thread:$0]  %s29, 2048, %s31, [#allocation7], 64, 64, 4
    $region9: #{tpu_custom_call.1} parent=1 // pred_fallthru
      _
    // Predicated region
    $region10: #{tpu_custom_call.1} parent=1 // pred_check
      _
    $region11: #{tpu_custom_call.1} parent=1 // pred_check_branch
      %38 = sbr.rel (0) target = $region13
    $region12: #{tpu_custom_call.1} parent=1 // pred_region
      %40 = vsyncadd [#allocation7], 0
      %s41 = sshll.u32 %s2, 4
      %s42 = int_to_ptr.hbm [resolvable:$true] %s41
      %s43 = sshll.u32 [#allocation8], 4
      %s44 = int_to_ptr.vmem [resolvable:$true] %s43
      %49 = dma.hbm_to_vmem [thread:$0]  %s42, 4352, %s44, [#allocation7], 128, 128, 8
    $region13: #{tpu_custom_call.1} parent=1 // pred_fallthru
      _
    // Predicated region
    $region14: #{tpu_custom_call.1} parent=1 // pred_check
      _
    $region15: #{tpu_custom_call.1} parent=1 // pred_check_branch
      %51 = sbr.rel (0) target = $region17
    $region16: #{tpu_custom_call.1} parent=1 // pred_region
      %53 = dma.done [#allocation4], 256
    $region17: #{tpu_custom_call.1} parent=1 // pred_fallthru
      _
    // Predicated region
    $region18: #{tpu_custom_call.1} parent=1 // pred_check
      _
    $region19: #{tpu_custom_call.1} parent=1 // pred_check_branch
      %55 = sbr.rel (0) target = $region21
    $region20: #{tpu_custom_call.1} parent=1 // pred_region
      %57 = dma.done [#allocation7], 2048
    $region21: #{tpu_custom_call.1} parent=1 // pred_fallthru
      _
    // Predicated region
    $region22: #{tpu_custom_call.1} parent=1 // pred_check
      _
    $region23: #{tpu_custom_call.1} parent=1 // pred_check_branch
      %59 = sbr.rel (0) target = $region25
    $region24: #{tpu_custom_call.1} parent=1 // pred_region
      %61 = dma.done [#allocation7], 4352
    $region25: #{tpu_custom_call.1} parent=1 // pred_fallthru
      _
    %p62 = scmp.eq.s32.totalorder 0, 0
    // Predicated region
    $region26: #{tpu_custom_call.1} parent=1 // pred_check
      %p63 = pneg %p62
    $region27: #{tpu_custom_call.1} parent=1 // pred_check_branch
      %65 = sbr.rel (%p63) target = $region29
    $region28: #{tpu_custom_call.1} parent=1 // pred_region
      %66 = vst [vmem:[#allocation2] sm:$0xff] 0.0
      %67 = vst [vmem:[#allocation2 + $0x8] sm:$0xff] 0.0
    $region29: #{tpu_custom_call.1} parent=1 // pred_fallthru
      _
    %v68 = vld [vmem:[#allocation2] sm:$0xff]
    %v69 = vld [vmem:[#allocation2 + $0x8] sm:$0xff]
    %v70 = vld [vmem:[#allocation3] sm:$0xff]
    %v71 = vld [vmem:[#allocation3 + $0x8] sm:$0xff]
    %v72 = vld [vmem:[#allocation6] sm:$0xf]
    %v73 = vld [vmem:[#allocation6 + $0x4] sm:$0xf]
    %v74 = vld [vmem:[#allocation6 + $0x8] sm:$0xf]
    %v75 = vld [vmem:[#allocation6 + $0xc] sm:$0xf]
    %v76 = vld [vmem:[#allocation6 + $0x10] sm:$0xf]
    %v77 = vld [vmem:[#allocation6 + $0x14] sm:$0xf]
    %v78 = vld [vmem:[#allocation6 + $0x18] sm:$0xf]
    %v79 = vld [vmem:[#allocation6 + $0x1c] sm:$0xf]
    %v80 = vld [vmem:[#allocation6 + $0x20] sm:$0xf]
    %v81 = vld [vmem:[#allocation6 + $0x24] sm:$0xf]
    %v82 = vld [vmem:[#allocation6 + $0x28] sm:$0xf]
    %v83 = vld [vmem:[#allocation6 + $0x2c] sm:$0xf]
    %v84 = vld [vmem:[#allocation6 + $0x30] sm:$0xf]
    %v85 = vld [vmem:[#allocation6 + $0x34] sm:$0xf]
    %v86 = vld [vmem:[#allocation6 + $0x38] sm:$0xf]
    %v87 = vld [vmem:[#allocation6 + $0x3c] sm:$0xf]
    %v88 = vld [vmem:[#allocation6 + $0x40] sm:$0xf]
    %v89 = vld [vmem:[#allocation6 + $0x44] sm:$0xf]
    %v90 = vld [vmem:[#allocation6 + $0x48] sm:$0xf]
    %v91 = vld [vmem:[#allocation6 + $0x4c] sm:$0xf]
    %v92 = vld [vmem:[#allocation6 + $0x50] sm:$0xf]
    %v93 = vld [vmem:[#allocation6 + $0x54] sm:$0xf]
    %v94 = vld [vmem:[#allocation6 + $0x58] sm:$0xf]
    %v95 = vld [vmem:[#allocation6 + $0x5c] sm:$0xf]
    %v96 = vld [vmem:[#allocation6 + $0x60] sm:$0xf]
    %v97 = vld [vmem:[#allocation6 + $0x64] sm:$0xf]
    %v98 = vld [vmem:[#allocation6 + $0x68] sm:$0xf]
    %v99 = vld [vmem:[#allocation6 + $0x6c] sm:$0xf]
    %v100 = vld [vmem:[#allocation6 + $0x70] sm:$0xf]
    %v101 = vld [vmem:[#allocation6 + $0x74] sm:$0xf]
    %v102 = vld [vmem:[#allocation6 + $0x78] sm:$0xf]
    %v103 = vld [vmem:[#allocation6 + $0x7c] sm:$0xf]
    %v106 = vunpack.c.l.b16 %v70
    %v107 = vunpack.c.h.b16 %v70
    %v108 = vunpack.c.l.b16 %v71
    %v109 = vunpack.c.h.b16 %v71
    %v110 = vpack.c.b16 %v108, %v106
    %v111 = vpack.c.b16 %v109, %v107
    %v146 = vunpack.c.l.b16 %v72
    %v147 = vunpack.c.l.b16 %v73
    %v148 = vunpack.c.l.b16 %v74
    %v149 = vunpack.c.l.b16 %v75
    %v150 = vunpack.c.l.b16 %v76
    %v151 = vunpack.c.l.b16 %v77
    %v152 = vunpack.c.l.b16 %v78
    %v153 = vunpack.c.l.b16 %v79
    %v154 = vunpack.c.l.b16 %v80
    %v155 = vunpack.c.l.b16 %v81
    %v156 = vunpack.c.l.b16 %v82
    %v157 = vunpack.c.l.b16 %v83
    %v158 = vunpack.c.l.b16 %v84
    %v159 = vunpack.c.l.b16 %v85
    %v160 = vunpack.c.l.b16 %v86
    %v161 = vunpack.c.l.b16 %v87
    %v162 = vunpack.c.l.b16 %v88
    %v163 = vunpack.c.l.b16 %v89
    %v164 = vunpack.c.l.b16 %v90
    %v165 = vunpack.c.l.b16 %v91
    %v166 = vunpack.c.l.b16 %v92
    %v167 = vunpack.c.l.b16 %v93
    %v168 = vunpack.c.l.b16 %v94
    %v169 = vunpack.c.l.b16 %v95
    %v170 = vunpack.c.l.b16 %v96
    %v171 = vunpack.c.l.b16 %v97
    %v172 = vunpack.c.l.b16 %v98
    %v173 = vunpack.c.l.b16 %v99
    %v174 = vunpack.c.l.b16 %v100
    %v175 = vunpack.c.l.b16 %v101
    %v176 = vunpack.c.l.b16 %v102
    %v177 = vunpack.c.l.b16 %v103
    %v178 = vpack.c.b16 %v147, %v146
    %v179 = vpack.c.b16 %v149, %v148
    %v180 = vpack.c.b16 %v151, %v150
    %v181 = vpack.c.b16 %v153, %v152
    %v182 = vpack.c.b16 %v155, %v154
    %v183 = vpack.c.b16 %v157, %v156
    %v184 = vpack.c.b16 %v159, %v158
    %v185 = vpack.c.b16 %v161, %v160
    %v186 = vpack.c.b16 %v163, %v162
    %v187 = vpack.c.b16 %v165, %v164
    %v188 = vpack.c.b16 %v167, %v166
    %v189 = vpack.c.b16 %v169, %v168
    %v190 = vpack.c.b16 %v171, %v170
    %v191 = vpack.c.b16 %v173, %v172
    %v192 = vpack.c.b16 %v175, %v174
    %v193 = vpack.c.b16 %v177, %v176
    %210 = vmatpush.bf16.msra.mxu0 %v185
    %211 = vmatpush.bf16.msra.mxu0 %v184
    %212 = vmatpush.bf16.msra.mxu0 %v183
    %213 = vmatpush.bf16.msra.mxu0 %v182
    %214 = vmatpush.bf16.msra.mxu0 %v181
    %215 = vmatpush.bf16.msra.mxu0 %v180
    %216 = vmatpush.bf16.msra.mxu0 %v179
    %217 = vmatpush.bf16.msra.mxu0 %v178
    %218 = vmatmul.bf16.gmra.mxu0 %v110
    %v219 = vpop.f32.mrf.mxu0
    %v220 = vadd.f32 0.0, %v219
    %v221 = vpop.f32.mrf.mxu0
    %v222 = vadd.f32 0.0, %v221
    %223 = vdwg.mxu0
    %224 = vmatpush.bf16.msra.mxu0 %v193
    %225 = vmatpush.bf16.msra.mxu0 %v192
    %226 = vmatpush.bf16.msra.mxu0 %v191
    %227 = vmatpush.bf16.msra.mxu0 %v190
    %228 = vmatpush.bf16.msra.mxu0 %v189
    %229 = vmatpush.bf16.msra.mxu0 %v188
    %230 = vmatpush.bf16.msra.mxu0 %v187
    %231 = vmatpush.bf16.msra.mxu0 %v186
    %232 = vmatmul.bf16.gmra.mxu0 %v111
    %v233 = vpop.f32.mrf.mxu0
    %v234 = vadd.f32 %v220, %v233
    %v235 = vpop.f32.mrf.mxu0
    %v236 = vadd.f32 %v222, %v235
    %237 = vdwg.mxu0
    %v238 = vadd.f32 %v68, %v234
    %v239 = vadd.f32 %v69, %v236
    %240 = vst [vmem:[#allocation2] sm:$0xff] %v238
    %241 = vst [vmem:[#allocation2 + $0x8] sm:$0xff] %v239
    // Predicated region
    $region30: #{tpu_custom_call.1} parent=1 // pred_check
      %p242 = pneg %p62
    $region31: #{tpu_custom_call.1} parent=1 // pred_check_branch
      %244 = sbr.rel (%p242) target = $region33
    $region32: #{tpu_custom_call.1} parent=1 // pred_region
      %v245 = vld [vmem:[#allocation8] sm:$0x1]
      %v246 = vld [vmem:[#allocation8 + $0x8] sm:$0xff]
      %v247 = vld [vmem:[#allocation8 + $0x10] sm:$0xff]
      %v248 = vld [vmem:[#allocation8 + $0x18] sm:$0xff]
      %v249 = vld [vmem:[#allocation8 + $0x20] sm:$0xff]
      %v250 = vld [vmem:[#allocation8 + $0x28] sm:$0xff]
      %v251 = vld [vmem:[#allocation8 + $0x30] sm:$0xff]
      %v252 = vld [vmem:[#allocation8 + $0x38] sm:$0xff]
      %v253 = vld [vmem:[#allocation8 + $0x40] sm:$0xff]
      %v254 = vld [vmem:[#allocation8 + $0x48] sm:$0xff]
      %v255 = vld [vmem:[#allocation8 + $0x50] sm:$0xff]
      %v256 = vld [vmem:[#allocation8 + $0x58] sm:$0xff]
      %v257 = vld [vmem:[#allocation8 + $0x60] sm:$0xff]
      %v258 = vld [vmem:[#allocation8 + $0x68] sm:$0xff]
      %v259 = vld [vmem:[#allocation8 + $0x70] sm:$0xff]
      %v260 = vld [vmem:[#allocation8 + $0x78] sm:$0xff]
      %v261 = vld [vmem:[#allocation8 + $0x80] sm:$0xff]
      %v262 = vld [vmem:[#allocation8 + $0x88] sm:$0x1]
      %v263 = vld [vmem:[#allocation8 + $0x90] sm:$0xff]
      %v264 = vld [vmem:[#allocation8 + $0x98] sm:$0xff]
      %v265 = vld [vmem:[#allocation8 + $0xa0] sm:$0xff]
      %v266 = vld [vmem:[#allocation8 + $0xa8] sm:$0xff]
      %v267 = vld [vmem:[#allocation8 + $0xb0] sm:$0xff]
      %v268 = vld [vmem:[#allocation8 + $0xb8] sm:$0xff]
      %v269 = vld [vmem:[#allocation8 + $0xc0] sm:$0xff]
      %v270 = vld [vmem:[#allocation8 + $0xc8] sm:$0xff]
      %v271 = vld [vmem:[#allocation8 + $0xd0] sm:$0xff]
      %v272 = vld [vmem:[#allocation8 + $0xd8] sm:$0xff]
      %v273 = vld [vmem:[#allocation8 + $0xe0] sm:$0xff]
      %v274 = vld [vmem:[#allocation8 + $0xe8] sm:$0xff]
      %v275 = vld [vmem:[#allocation8 + $0xf0] sm:$0xff]
      %v276 = vld [vmem:[#allocation8 + $0xf8] sm:$0xff]
      %v277 = vld [vmem:[#allocation8 + $0x100] sm:$0xff]
      %v278 = vld [vmem:[#allocation8 + $0x108] sm:$0xff]
      %v279 = vld [vmem:[#allocation2] sm:$0xff]
      %v280 = vld [vmem:[#allocation2 + $0x8] sm:$0xff]
      %v281 = vperm.slane %v245, 0
      %v282 = vadd.f32 %v279, %v281
      %v283 = vadd.f32 %v280, %v281
      %v284 = vmax.f32 %v282, 0.0
      %v285 = vmax.f32 %v283, 0.0
      %v286 = vperm.slane %v262, 0
      %287 = vmatpush.msra.mxu0 %v261
      %288 = vmatpush.msra.mxu0 %v260
      %289 = vmatpush.msra.mxu0 %v259
      %290 = vmatpush.msra.mxu0 %v258
      %291 = vmatpush.msra.mxu0 %v257
      %292 = vmatpush.msra.mxu0 %v256
      %293 = vmatpush.msra.mxu0 %v255
      %294 = vmatpush.msra.mxu0 %v254
      %295 = vmatpush.msra.mxu0 %v253
      %296 = vmatpush.msra.mxu0 %v252
      %297 = vmatpush.msra.mxu0 %v251
      %298 = vmatpush.msra.mxu0 %v250
      %299 = vmatpush.msra.mxu0 %v249
      %300 = vmatpush.msra.mxu0 %v248
      %301 = vmatpush.msra.mxu0 %v247
      %302 = vmatpush.msra.mxu0 %v246
      %303 = vmatmul.f32.gmra.mxu0 %v284
      %v304 = vpop.f32.mrf.mxu0
      %v305 = vadd.f32 %v286, %v304
      %306 = vmatmul.f32.gmra.mxu0 %v285
      %v307 = vpop.f32.mrf.mxu0
      %v308 = vadd.f32 %v286, %v307
      %309 = vdwg.mxu0
      %v310 = vmax.f32 %v305, 0.0
      %v311 = vmax.f32 %v308, 0.0
      %312 = vmatpush.msra.mxu0 %v278
      %313 = vmatpush.msra.mxu0 %v277
      %314 = vmatpush.msra.mxu0 %v276
      %315 = vmatpush.msra.mxu0 %v275
      %316 = vmatpush.msra.mxu0 %v274
      %317 = vmatpush.msra.mxu0 %v273
      %318 = vmatpush.msra.mxu0 %v272
      %319 = vmatpush.msra.mxu0 %v271
      %320 = vmatpush.msra.mxu0 %v270
      %321 = vmatpush.msra.mxu0 %v269
      %322 = vmatpush.msra.mxu0 %v268
      %323 = vmatpush.msra.mxu0 %v267
      %324 = vmatpush.msra.mxu0 %v266
      %325 = vmatpush.msra.mxu0 %v265
      %326 = vmatpush.msra.mxu0 %v264
      %327 = vmatpush.msra.mxu0 %v263
      %328 = vmatmul.f32.gmra.mxu0 %v310
      %v329 = vpop.f32.mrf.mxu0
      %v330 = vadd.f32 0.0, %v329
      %331 = vmatmul.f32.gmra.mxu0 %v311
      %v332 = vpop.f32.mrf.mxu0
      %v333 = vadd.f32 0.0, %v332
      %334 = vdwg.mxu0
      %335 = vst [vmem:[#allocation9] sm:$0xff] %v330
      %336 = vst [vmem:[#allocation9 + $0x8] sm:$0xff] %v333
    $region33: #{tpu_custom_call.1} parent=1 // pred_fallthru
      _
    // Predicated region
    $region34: #{tpu_custom_call.1} parent=1 // pred_check
      _
    $region35: #{tpu_custom_call.1} parent=1 // pred_check_branch
      %338 = sbr.rel (0) target = $region37
    $region36: #{tpu_custom_call.1} parent=1 // pred_region
      %340 = vsyncadd [#allocation5], 0
      %s341 = sshll.u32 [#allocation9], 4
      %s342 = int_to_ptr.vmem [resolvable:$true] %s341
      %s343 = sshll.u32 %s3, 4
      %s344 = int_to_ptr.hbm [resolvable:$true] %s343
      %349 = dma.vmem_to_hbm [thread:$0]  %s342, 256, %s344, [#allocation5], 128, 128, 8
    $region37: #{tpu_custom_call.1} parent=1 // pred_fallthru
      _
    // Predicated region
    $region38: #{tpu_custom_call.1} parent=1 // pred_check
      _
    $region39: #{tpu_custom_call.1} parent=1 // pred_check_branch
      %351 = sbr.rel (0) target = $region41
    $region40: #{tpu_custom_call.1} parent=1 // pred_region
      %353 = dma.done [#allocation5], 256
    $region41: #{tpu_custom_call.1} parent=1 // pred_fallthru
      _
    %354 = vsyncpa [#allocation4], 1
    %355 = vsyncpa [#allocation7], 1
    %356 = vsyncpa [#allocation5], 1

</llo_original>
